<compile_context>
chip_gen: v7x
topology: tpu7x:2x2x1
jax: 0.10.0
libtpu: 0.0.40
codegen_flags: <defaults>
</compile_context>

<pallas_src>
import jax
import jax.numpy as jnp
from jax.experimental import pallas as pl
from jax.experimental.pallas import tpu as pltpu

_LANE = 128


def _round_up(v, m):
    return (v + m - 1) // m * m


def _vmem_ceiling_bytes():
    """~75% of physical per-core VMEM (v7x: 64 MiB -> 48; v5e/v6e: 128 -> 96)."""
    try:
        cap = int(pltpu.get_tpu_info().vmem_capacity_bytes)
    except Exception:  # interpret mode / non-TPU / older jax
        cap = 64 << 20
    return (cap * 3) // 4


def _pick_tm(n_pad, batch, row_tile, vmem_ceiling):
    """Row-tile size: largest {row_tile..128} divisor of n_pad, VMEM- and
    megacore-aware."""
    tm = 128
    for cand in (1024, 512, 256):
        if cand <= row_tile and n_pad % cand == 0:
            tm = max(tm, cand)
    # Keep the double-buffered bf16 adj row tile within ~half the VMEM budget
    # (leaves room for h_full, W, output tiles and the f32 intermediate).
    while tm > 128 and 2 * tm * n_pad * 2 > vmem_ceiling // 2:
        tm //= 2
    # v7x megacore: guarantee >= 2 grid steps even at B == 1 (row tiles only
    # need sublane alignment, i.e. multiples of 8).
    while batch * (n_pad // tm) < 2:
        nt = tm // 2
        if nt < 8 or nt % 8 != 0 or n_pad % nt != 0:
            break
        tm = nt
    return tm


def _pad3(a, rows, cols, dtype):
    """Cast + zero-pad the last two dims of a (B, R, C) array; no-op when
    already aligned (avoids a full extra HBM round trip of adj)."""
    a = a.astype(dtype)
    pr, pc = rows - a.shape[1], cols - a.shape[2]
    if pr == 0 and pc == 0:
        return a
    return jnp.pad(a, ((0, 0), (0, pr), (0, pc)))


# ----------------------------------------------------------------- kernel


def _fused_gcn_kernel(adj_ref, h_ref, w_ref, b_ref, alpha_ref, o_ref):
    # adj_ref:   (1, TM, Np)  bf16 row tile of the adjacency
    # h_ref:     (1, Np, Fi)  bf16 full activations, constant along row-tile axis
    # w_ref:     (Fi, Fo)     bf16
    # b_ref:     (1, Fo)      f32
    # alpha_ref: (1, 1)       f32, SMEM (scalar path)
    # o_ref:     (1, TM, Fo)
    tmp = jnp.dot(adj_ref[0], h_ref[0], preferred_element_type=jnp.float32)
    # One extra bf16 rounding of the (TM, Fi) intermediate vs the f32 torch
    # reference; covered by the widened test tolerance.
    acc = jnp.dot(tmp.astype(jnp.bfloat16), w_ref[...],
                  preferred_element_type=jnp.float32)
    acc = acc + b_ref[...]                               # bias in f32
    alpha = alpha_ref[0, 0]
    o_ref[0] = jnp.where(acc >= 0.0, acc, alpha * acc).astype(o_ref.dtype)  # PReLU f32


# ------------------------------------------------------------- layer wrapper


def _fused_gcn_layer(h, adj_p, w_p, b_p, alpha_p, *, tm, out_dtype, vmem_ceiling):
    """One GCN layer, fused (adj_tile @ h_full) @ W + bias -> PReLU.

    h:       (B, Np, Fi_pad)  bf16
    adj_p:   (B, Np, Np)      bf16
    w_p:     (Fi_pad, Fo_pad) bf16
    b_p:     (1, Fo_pad)      f32
    alpha_p: (1, 1)           f32
    """
    B, n_pad, fi_pad = h.shape
    fo_pad = w_p.shape[1]
    assert fi_pad == w_p.shape[0]
    assert n_pad % tm == 0
    r = n_pad // tm
    out_isize = 4 if out_dtype == jnp.float32 else 2

    # h_full's block index is constant along the inner (row-tile) axis, so its
    # second pipeline buffer is never used; drop it when the block is large.
    h_kwargs = {}
    if n_pad * fi_pad * 2 > (4 << 20):
        h_kwargs["pipeline_mode"] = pl.Buffered(1)
    h_bufs = 1 if h_kwargs else 2

    vmem_est = (
        2 * tm * n_pad * 2              # adj row tile, double-buffered, bf16
        + h_bufs * n_pad * fi_pad * 2   # resident h block, bf16
        + 2 * fi_pad * fo_pad * 2       # W, bf16
        + 2 * fo_pad * 4                # bias, f32
        + 2 * tm * fo_pad * out_isize   # output tile, double-buffered
        + tm * fi_pad * (4 + 2)         # f32 intermediate + its bf16 cast
    )
    vmem_limit = int(min(vmem_ceiling, max(32 << 20, 2 * vmem_est)))

    return pl.pallas_call(
        _fused_gcn_kernel,
        out_shape=jax.ShapeDtypeStruct((B, n_pad, fo_pad), out_dtype),
        grid_spec=pltpu.PrefetchScalarGridSpec(
            num_scalar_prefetch=0,
            grid=(B, r),
            in_specs=[
                pl.BlockSpec((1, tm, n_pad), lambda bi, ri: (bi, ri, 0)),
                pl.BlockSpec((1, n_pad, fi_pad), lambda bi, ri: (bi, 0, 0),
                             **h_kwargs),
                pl.BlockSpec((fi_pad, fo_pad), lambda bi, ri: (0, 0)),
                pl.BlockSpec((1, fo_pad), lambda bi, ri: (0, 0)),
                pl.BlockSpec(memory_space=pltpu.MemorySpace.SMEM),
            ],
            out_specs=pl.BlockSpec((1, tm, fo_pad), lambda bi, ri: (bi, ri, 0)),
        ),
        compiler_params=pltpu.CompilerParams(
            dimension_semantics=("parallel", "parallel"),
            vmem_limit_bytes=vmem_limit,
        ),
        cost_estimate=pl.CostEstimate(
            flops=2 * B * n_pad * n_pad * fi_pad + 2 * B * n_pad * fi_pad * fo_pad,
            transcendentals=0,
            bytes_accessed=(
                B * n_pad * n_pad * 2          # adj (bf16), dominant term
                + B * n_pad * fi_pad * 2       # h (bf16), read once per batch elem
                + fi_pad * fo_pad * 2          # W
                + fo_pad * 4                   # bias
                + B * n_pad * fo_pad * out_isize
            ),
        ),
    )(adj_p, h, w_p, b_p, alpha_p)


# --------------------------------------------------------------- Encoder API


def init_encoder_params(key, in_ft, out_ft, n_layers):
    """Xavier-uniform W, zero bias, PReLU alpha = 0.25 (torch defaults)."""
    params = []
    dims = [in_ft] + [out_ft] * n_layers
    for i in range(n_layers):
        key, kw = jax.random.split(key)
        fan_in, fan_out = dims[i], dims[i + 1]
        limit = (6.0 / (fan_in + fan_out)) ** 0.5
        w = jax.random.uniform(kw, (fan_in, fan_out), jnp.float32, -limit, limit)
        b = jnp.zeros((fan_out,), jnp.float32)
        alpha = jnp.array(0.25, jnp.float32)
        params.append((w, b, alpha))
    return params


def encoder_forward(params, x, adj, *, row_tile=256):
    """Equivalent of Encoder.forward(x, adj, sparse=False)."""
    B, N, in_ft = x.shape
    out_ft = params[-1][0].shape[1]

    vmem_ceiling = _vmem_ceiling_bytes()
    n_pad = _round_up(N, _LANE)          # minimal node padding (128 lanes only)
    tm = _pick_tm(n_pad, B, row_tile, vmem_ceiling)
    fin_pad = _round_up(in_ft, _LANE)

    # Padded regions (rows AND columns) of adj_p must stay exactly zero — see
    # the correctness invariant in the header comment.
    x_p = _pad3(x, n_pad, fin_pad, jnp.bfloat16)
    adj_p = _pad3(adj, n_pad, n_pad, jnp.bfloat16)

    h = x_p
    n_layers = len(params)
    for li, (w, b, alpha) in enumerate(params):
        fi, fo = w.shape
        fi_pad = _round_up(fi, _LANE)
        fo_pad = _round_up(fo, _LANE)
        assert fi_pad == h.shape[-1]
        w_p = jnp.zeros((fi_pad, fo_pad), jnp.bfloat16)
        w_p = w_p.at[:fi, :fo].set(w.astype(jnp.bfloat16))
        b_p = jnp.zeros((1, fo_pad), jnp.float32).at[0, :fo].set(b.astype(jnp.float32))
        a_p = jnp.reshape(alpha.astype(jnp.float32), (1, 1))
        last = li == n_layers - 1
        # Intermediate layers stay bf16 (feed the next layer's MXU directly);
        # the last layer is emitted in f32 (bias/PReLU always applied in f32).
        h = _fused_gcn_layer(
            h, adj_p, w_p, b_p, a_p,
            tm=tm, vmem_ceiling=vmem_ceiling,
            out_dtype=jnp.float32 if last else jnp.bfloat16,
        )

    h = h[:, :N, :out_ft]
    return h, jnp.squeeze(h), None


def _reference_forward(params, x, adj):
    h = x
    for (w, b, alpha) in params:
        out = jnp.einsum("bnm,bmf->bnf", adj, jnp.einsum("bni,if->bnf", h, w)) + b
        h = jnp.where(out >= 0, out, alpha * out)
    return h


if __name__ == "__main__":
    B, N, in_ft, out_ft, n_layers = 2, 16, 8, 32, 2

    key = jax.random.PRNGKey(0)
    kx, ka, kp = jax.random.split(key, 3)

    x = jax.random.normal(kx, (B, N, in_ft), jnp.float32)

    # Symmetric, row-normalized dense adjacency (self-loops included).
    a = (jax.random.uniform(ka, (B, N, N)) > 0.7).astype(jnp.float32)
    a = jnp.maximum(a, jnp.transpose(a, (0, 2, 1)))
    a = a + jnp.eye(N, dtype=jnp.float32)[None]
    adj = a / jnp.sum(a, axis=-1, keepdims=True)

    params = init_encoder_params(kp, in_ft, out_ft, n_layers)

    h, mu, logvar = encoder_forward(params, x, adj)
    jax.block_until_ready(h)

    ref = _reference_forward(params, x, adj)
    assert h.shape == (B, N, out_ft)
    assert mu.shape == (B, N, out_ft)
    assert logvar is None
    # bf16 operands with f32 accumulation (and the fused reassociation's extra
    # bf16 rounding of the intermediate): compare against the f32 reference
    # with a correspondingly widened tolerance.
    assert jnp.allclose(h, ref, atol=3e-2, rtol=3e-2)

    print("KERNEL_OK")
</pallas_src>

<mosaic_0001>
module attributes {stable_mosaic.version = 11 : i64} {
  func.func @_fused_gcn_kernel(%arg0: i32, %arg1: i32, %arg2: memref<1x128x128xbf16, #tpu.memory_space<vmem>>, %arg3: memref<1x128x128xbf16, #tpu.memory_space<vmem>>, %arg4: memref<128x128xbf16, #tpu.memory_space<vmem>>, %arg5: memref<1x128xf32, #tpu.memory_space<vmem>>, %arg6: memref<1x1xf32, #tpu.memory_space<smem>>, %arg7: memref<1x128x128xbf16, #tpu.memory_space<vmem>>) attributes {dimension_semantics = [#tpu.dimension_semantics<parallel>, #tpu.dimension_semantics<parallel>], iteration_bounds = array<i64: 2, 1>, scalar_prefetch = 0 : i64, scratch_operands = 0 : i64, tpu.core_type = #tpu.core_type<tc>, window_params = [{transform_indices = @transform_0, window_bounds = array<i64: 1, 128, 128>}, {transform_indices = @transform_1, window_bounds = array<i64: 1, 128, 128>}, {pipeline_mode = #tpu.pipeline_mode<synchronous>, transform_indices = @transform_2, window_bounds = array<i64: 128, 128>}, {pipeline_mode = #tpu.pipeline_mode<synchronous>, transform_indices = @transform_3, window_bounds = array<i64: 1, 128>}, {transform_indices = @transform_4, window_bounds = array<i64: 1, 1>}, {transform_indices = @transform_5, window_bounds = array<i64: 1, 128, 128>}]} {
    %c0 = arith.constant 0 : index
    %c0_0 = arith.constant 0 : index
    %c0_1 = arith.constant 0 : index
    %0 = vector.load %arg2[%c0, %c0_0, %c0_1] : memref<1x128x128xbf16, #tpu.memory_space<vmem>>, vector<1x128x128xbf16>
    %1 = vector.shape_cast %0 : vector<1x128x128xbf16> to vector<128x128xbf16>
    %c0_2 = arith.constant 0 : index
    %c0_3 = arith.constant 0 : index
    %c0_4 = arith.constant 0 : index
    %2 = vector.load %arg3[%c0_2, %c0_3, %c0_4] : memref<1x128x128xbf16, #tpu.memory_space<vmem>>, vector<1x128x128xbf16>
    %3 = vector.shape_cast %2 : vector<1x128x128xbf16> to vector<128x128xbf16>
    %cst = arith.constant dense<0.000000e+00> : vector<128x128xf32>
    %4 = tpu.matmul %1, %3, %cst {dimension_numbers = #tpu.dot_dimension_numbers<[1], [0], [0], [1], [0, 0, 1, 1], [], []>} : vector<128x128xbf16>, vector<128x128xbf16>, vector<128x128xf32> -> vector<128x128xf32>
    %5 = arith.truncf %4 : vector<128x128xf32> to vector<128x128xbf16>
    %c0_5 = arith.constant 0 : index
    %c0_6 = arith.constant 0 : index
    %6 = vector.load %arg4[%c0_5, %c0_6] : memref<128x128xbf16, #tpu.memory_space<vmem>>, vector<128x128xbf16>
    %cst_7 = arith.constant dense<0.000000e+00> : vector<128x128xf32>
    %7 = tpu.matmul %5, %6, %cst_7 {dimension_numbers = #tpu.dot_dimension_numbers<[1], [0], [0], [1], [0, 0, 1, 1], [], []>} : vector<128x128xbf16>, vector<128x128xbf16>, vector<128x128xf32> -> vector<128x128xf32>
    %c0_8 = arith.constant 0 : index
    %c0_9 = arith.constant 0 : index
    %8 = vector.load %arg5[%c0_8, %c0_9] : memref<1x128xf32, #tpu.memory_space<vmem>>, vector<1x128xf32>
    %9 = vector.broadcast %8 : vector<1x128xf32> to vector<128x128xf32>
    %10 = arith.addf %7, %9 : vector<128x128xf32>
    %c0_10 = arith.constant 0 : index
    %c0_11 = arith.constant 0 : index
    %11 = memref.load %arg6[%c0_10, %c0_11] : memref<1x1xf32, #tpu.memory_space<smem>>
    %cst_12 = arith.constant 0.000000e+00 : f32
    %12 = vector.broadcast %cst_12 : f32 to vector<128x128xf32>
    %13 = arith.cmpf oge, %10, %12 : vector<128x128xf32>
    %14 = vector.broadcast %11 : f32 to vector<128x128xf32>
    %15 = arith.mulf %14, %10 : vector<128x128xf32>
    %16 = arith.select %13, %10, %15 : vector<128x128xi1>, vector<128x128xf32>
    %17 = arith.truncf %16 : vector<128x128xf32> to vector<128x128xbf16>
    %c0_13 = arith.constant 0 : index
    %c0_14 = arith.constant 0 : index
    %c0_15 = arith.constant 0 : index
    %18 = vector.load %arg7[%c0_13, %c0_14, %c0_15] : memref<1x128x128xbf16, #tpu.memory_space<vmem>>, vector<1x128x128xbf16>
    %19 = vector.shape_cast %18 : vector<1x128x128xbf16> to vector<128x128xbf16>
    %20 = vector.shape_cast %17 : vector<128x128xbf16> to vector<1x128x128xbf16>
    tpu.vector_store %arg7[%c0_13, %c0_14, %c0_15], %20 {strides = array<i32>} : memref<1x128x128xbf16, #tpu.memory_space<vmem>>, vector<1x128x128xbf16>,
    return
  }
  func.func @transform_0(%arg0: i32, %arg1: i32) -> (i32, i32, i32) {
    %c0_i32 = arith.constant 0 : i32
    %c0_i32_0 = arith.constant 0 : i32
    return %arg0, %arg1, %c0_i32 : i32, i32, i32
  }
  func.func @transform_1(%arg0: i32, %arg1: i32) -> (i32, i32, i32) {
    %c0_i32 = arith.constant 0 : i32
    %c0_i32_0 = arith.constant 0 : i32
    %c0_i32_1 = arith.constant 0 : i32
    return %arg0, %c0_i32, %c0_i32_0 : i32, i32, i32
  }
  func.func @transform_2(%arg0: i32, %arg1: i32) -> (i32, i32) {
    %c0_i32 = arith.constant 0 : i32
    %c0_i32_0 = arith.constant 0 : i32
    %c0_i32_1 = arith.constant 0 : i32
    return %c0_i32, %c0_i32_0 : i32, i32
  }
  func.func @transform_3(%arg0: i32, %arg1: i32) -> (i32, i32) {
    %c0_i32 = arith.constant 0 : i32
    %c0_i32_0 = arith.constant 0 : i32
    %c0_i32_1 = arith.constant 0 : i32
    return %c0_i32, %c0_i32_0 : i32, i32
  }
  func.func @transform_4(%arg0: i32, %arg1: i32) -> (i32, i32) {
    %c0_i32 = arith.constant 0 : i32
    %c0_i32_0 = arith.constant 0 : i32
    %c0_i32_1 = arith.constant 0 : i32
    return %c0_i32, %c0_i32_0 : i32, i32
  }
  func.func @transform_5(%arg0: i32, %arg1: i32) -> (i32, i32, i32) {
    %c0_i32 = arith.constant 0 : i32
    %c0_i32_0 = arith.constant 0 : i32
    return %arg0, %arg1, %c0_i32 : i32, i32, i32
  }
}

</mosaic_0001>

<llo_original>
// kernel: tpu_custom_call.1
$region0: #{tpu_custom_call.1}
  #allocation0 [shape = 'u32[]', space=smem, size = 0x4, offset = 0x4, fixed_abs, tag = 'smem constant byte address 0x4 - core index']
  #allocation1 [shape = 'u32[144,128]{1,0:T(1,128)}', space=vmem, size = 0x12000, scoped, tag = 'internal scratch']
  #allocation2 [shape = 'f32[1,1]{1,0:T(1,128)S(6)}', space=smem, size = 0x200, scoped, tag = 'scoped memory for tpu_custom_call.1']
  %s0 = inlined_call_operand.hbm [shape: bf16[2,128,128], index: 0, kind: input, shape index: {}]
  %s1 = inlined_call_operand.hbm [shape: bf16[2,128,128], index: 1, kind: input, shape index: {}]
  %s2 = inlined_call_operand.hbm [shape: bf16[128,128], index: 2, kind: input, shape index: {}]
  %s3 = inlined_call_operand.vmem [shape: f32[1,128], index: 3, kind: input, shape index: {}]
  %s4 = inlined_call_operand.<no memory space> [shape: f32[1,1], index: 4, kind: input, shape index: {}]
  %s5 = inlined_call_operand.hbm [shape: bf16[2,128,128], index: 5, kind: output, shape index: {}]
  %s6 = sld [smem:[#allocation0]]
  $region65: #{tpu_custom_call.1} parent=0
    _
  %s8 = ssub.s32 1, %s6
  %s9 = scalar_select 0, %s8, %s6
  %10 = sst [smem:[#allocation2]] %s4
  $region1: #{tpu_custom_call.1} parent=0
    #allocation3 [shape = 'u8[65536]{0}', space=vmem, size = 0x10000, scoped, tag = 'input window, operand 0']
    #allocation4 [shape = 's32[2]{0}', space=sflag, size = 0x8, scoped, tag = 'scoped memory for tpu_custom_call.1']
    #allocation5 [shape = 's32[2]{0}', space=sflag, size = 0x8, scoped, tag = 'scoped memory for tpu_custom_call.1']
    #allocation6 [shape = 'u8[65536]{0}', space=vmem, size = 0x10000, scoped, tag = 'input window, operand 1']
    #allocation7 [shape = 's32[2]{0}', space=sflag, size = 0x8, scoped, tag = 'scoped memory for tpu_custom_call.1']
    #allocation8 [shape = 'u8[32768]{0}', space=vmem, size = 0x8000, scoped, tag = 'input window, operand 2, single buffered']
    #allocation9 [shape = 'u8[65536]{0}', space=vmem, size = 0x10000, scoped, tag = 'output window, operand 0']
    %11 = vsyncpa [#allocation4], 0
    %s12 = scalar_lea.sflag [#allocation4], 1
    %13 = vsyncpa %s12, 0
    %14 = vsyncpa [#allocation7], 0
    %s15 = scalar_lea.sflag [#allocation7], 1
    %16 = vsyncpa %s15, 0
    %17 = vsyncpa [#allocation5], 0
    %s18 = scalar_lea.sflag [#allocation5], 1
    %19 = vsyncpa %s18, 0
    loop: start=0, step=1, limit=4
    $region2: #{tpu_custom_call.1} parent=1 // loop_pre_header
      _
    $region3: #{tpu_custom_call.1} parent=1 // loop_header
      %s21 = sphi 0, %s25
      %p22 = scmp.ge.s32.totalorder %s21, 4
      %s28 = sphi 0, %s40
      %s29 = sphi 0, %s36
      %s30 = sphi 0, %s28
      %s31 = sphi 0, %s29
      %s32 = sphi 0, %s30
      %s33 = sphi 0, %s31
      %s45 = sphi 0, %s47
      %s48 = sphi 0, %s45
      %s49 = sphi 0, %s48
      %s65 = sphi 0, %s49
      %s71 = sphi 0, %s73
      %s74 = sphi 0, %s71
      %s75 = sphi 0, %s74
      %s91 = sphi 0, %s75
      %s95 = sphi 0, %s95
      %s97 = sphi 0, %s95
      %s98 = sphi 0, %s97
      %s112 = sphi 0, %s98
      %s116 = sphi 0, %s116
      %s118 = sphi 0, %s116
      %s119 = sphi 0, %s118
      %s133 = sphi 0, %s119
      %s137 = sphi 0, %s137
      %s139 = sphi 0, %s137
      %s140 = sphi 0, %s139
      %s154 = sphi 0, %s140
      %s162 = sphi 0, %s164
      %s165 = sphi 0, %s162
      %s166 = sphi 0, %s165
      %s182 = sphi 0, %s166
    $region4: #{tpu_custom_call.1} parent=1 // loop_header_branch
      %24 = sbr.rel (%p22) target = $region8
    $region5: #{tpu_custom_call.1} parent=1 // loop_body
      %s26 = ssub.s32 %s21, 1
      %s27 = ssub.s32 %s21, 2
      %s34 = sadd.s32 1, %s29
      %p35 = scmp.ge.s32.totalorder %s34, 1
      %s36 = scalar_select %p35, 0, %s34
      %s37 = sadd.s32 1, %s28
      %s38 = scalar_select %p35, %s37, %s28
      %p39 = scmp.ge.s32.totalorder %s38, 2
      %s40 = scalar_select %p39, 0, %s38
      %s41 = ssub.s32 %s28, %s40
      %s42 = ssub.s32 %s29, %s36
      %s43 = sor.u32 %s41, %s42
      %p44 = scmp.eq.s32.totalorder %s43, 0
      %s46 = sadd.s32 %s45, 1
      %s47 = scalar_select %p44, %s45, %s46
      %p50 = pneg %p44
      %p51 = scmp.eq.s32.totalorder %s21, 1
      %p52 = por %p50, %p51
      %p53 = scmp.ne.s32.totalorder %s45, %s48
      %p54 = scmp.eq.s32.totalorder %s21, 0
      %p55 = por %p53, %p54
      %p56 = scmp.ne.s32.totalorder %s45, %s48
      %p57 = scmp.eq.s32.totalorder %s26, 1
      %p58 = por %p56, %p57
      %p59 = scmp.ne.s32.totalorder %s48, %s49
      %p60 = scmp.eq.s32.totalorder %s26, 0
      %p61 = por %p59, %p60
      %p62 = scmp.ne.s32.totalorder %s48, %s49
      %p63 = scmp.eq.s32.totalorder %s27, 1
      %p64 = por %p62, %p63
      %p66 = scmp.ne.s32.totalorder %s49, %s65
      %p67 = scmp.eq.s32.totalorder %s27, 0
      %p68 = por %p66, %p67
      %s69 = ssub.s32 %s28, %s40
      %p70 = scmp.eq.s32.totalorder %s69, 0
      %s72 = sadd.s32 %s71, 1
      %s73 = scalar_select %p70, %s71, %s72
      %p76 = pneg %p70
      %p77 = scmp.eq.s32.totalorder %s21, 1
      %p78 = por %p76, %p77
      %p79 = scmp.ne.s32.totalorder %s71, %s74
      %p80 = scmp.eq.s32.totalorder %s21, 0
      %p81 = por %p79, %p80
      %p82 = scmp.ne.s32.totalorder %s71, %s74
      %p83 = scmp.eq.s32.totalorder %s26, 1
      %p84 = por %p82, %p83
      %p85 = scmp.ne.s32.totalorder %s74, %s75
      %p86 = scmp.eq.s32.totalorder %s26, 0
      %p87 = por %p85, %p86
      %p88 = scmp.ne.s32.totalorder %s74, %s75
      %p89 = scmp.eq.s32.totalorder %s27, 1
      %p90 = por %p88, %p89
      %p92 = scmp.ne.s32.totalorder %s75, %s91
      %p93 = scmp.eq.s32.totalorder %s27, 0
      %p94 = por %p92, %p93
      %s96 = sadd.s32 %s95, 1
      %p99 = scmp.eq.s32.totalorder %s21, 1
      %p100 = scmp.ne.s32.totalorder %s95, %s97
      %p101 = scmp.eq.s32.totalorder %s21, 0
      %p102 = por %p100, %p101
      %p103 = scmp.ne.s32.totalorder %s95, %s97
      %p104 = scmp.eq.s32.totalorder %s26, 1
      %p105 = por %p103, %p104
      %p106 = scmp.ne.s32.totalorder %s97, %s98
      %p107 = scmp.eq.s32.totalorder %s26, 0
      %p108 = por %p106, %p107
      %p109 = scmp.ne.s32.totalorder %s97, %s98
      %p110 = scmp.eq.s32.totalorder %s27, 1
      %p111 = por %p109, %p110
      %p113 = scmp.ne.s32.totalorder %s98, %s112
      %p114 = scmp.eq.s32.totalorder %s27, 0
      %p115 = por %p113, %p114
      %s117 = sadd.s32 %s116, 1
      %p120 = scmp.eq.s32.totalorder %s21, 1
      %p121 = scmp.ne.s32.totalorder %s116, %s118
      %p122 = scmp.eq.s32.totalorder %s21, 0
      %p123 = por %p121, %p122
      %p124 = scmp.ne.s32.totalorder %s116, %s118
      %p125 = scmp.eq.s32.totalorder %s26, 1
      %p126 = por %p124, %p125
      %p127 = scmp.ne.s32.totalorder %s118, %s119
      %p128 = scmp.eq.s32.totalorder %s26, 0
      %p129 = por %p127, %p128
      %p130 = scmp.ne.s32.totalorder %s118, %s119
      %p131 = scmp.eq.s32.totalorder %s27, 1
      %p132 = por %p130, %p131
      %p134 = scmp.ne.s32.totalorder %s119, %s133
      %p135 = scmp.eq.s32.totalorder %s27, 0
      %p136 = por %p134, %p135
      %s138 = sadd.s32 %s137, 1
      %p141 = scmp.eq.s32.totalorder %s21, 1
      %p142 = scmp.ne.s32.totalorder %s137, %s139
      %p143 = scmp.eq.s32.totalorder %s21, 0
      %p144 = por %p142, %p143
      %p145 = scmp.ne.s32.totalorder %s137, %s139
      %p146 = scmp.eq.s32.totalorder %s26, 1
      %p147 = por %p145, %p146
      %p148 = scmp.ne.s32.totalorder %s139, %s140
      %p149 = scmp.eq.s32.totalorder %s26, 0
      %p150 = por %p148, %p149
      %p151 = scmp.ne.s32.totalorder %s139, %s140
      %p152 = scmp.eq.s32.totalorder %s27, 1
      %p153 = por %p151, %p152
      %p155 = scmp.ne.s32.totalorder %s140, %s154
      %p156 = scmp.eq.s32.totalorder %s27, 0
      %p157 = por %p155, %p156
      %s158 = ssub.s32 %s28, %s40
      %s159 = ssub.s32 %s29, %s36
      %s160 = sor.u32 %s158, %s159
      %p161 = scmp.eq.s32.totalorder %s160, 0
      %s163 = sadd.s32 %s162, 1
      %s164 = scalar_select %p161, %s162, %s163
      %p167 = pneg %p161
      %p168 = scmp.eq.s32.totalorder %s21, 1
      %p169 = por %p167, %p168
      %p170 = scmp.ne.s32.totalorder %s162, %s165
      %p171 = scmp.eq.s32.totalorder %s21, 0
      %p172 = por %p170, %p171
      %p173 = scmp.ne.s32.totalorder %s162, %s165
      %p174 = scmp.eq.s32.totalorder %s26, 1
      %p175 = por %p173, %p174
      %p176 = scmp.ne.s32.totalorder %s165, %s166
      %p177 = scmp.eq.s32.totalorder %s26, 0
      %p178 = por %p176, %p177
      %p179 = scmp.ne.s32.totalorder %s165, %s166
      %p180 = scmp.eq.s32.totalorder %s27, 1
      %p181 = por %p179, %p180
      %p183 = scmp.ne.s32.totalorder %s166, %s182
      %p184 = scmp.eq.s32.totalorder %s27, 0
      %p185 = por %p183, %p184
      %p186 = scmp.le.s32.totalorder 1, %s21
      %p187 = scmp.lt.s32.totalorder %s21, 3
      %p188 = pnand %p186, %p187
      %p189 = pneg %p188
      // Predicated region
      $region9: #{tpu_custom_call.1} parent=5 // pred_check
        _
      $region10: #{tpu_custom_call.1} parent=5 // pred_check_branch
        %191 = sbr.rel (%p188) target = $region12
      $region11: #{tpu_custom_call.1} parent=5 // pred_region
        %s192 = ssub.s32 %s21, 1
        // Predicated region
        $region13: #{tpu_custom_call.1} parent=11 // pred_check
          %p193 = pneg %p108
        $region14: #{tpu_custom_call.1} parent=11 // pred_check_branch
          %195 = sbr.rel (%p193) target = $region16
        $region15: #{tpu_custom_call.1} parent=11 // pred_region
          %s197 = ssub.s32 1024, 1024
          %198 = vsyncadd [#allocation7], %s197
          %s199 = sshll.u32 [#allocation8], 4
          %s200 = int_to_ptr.vmem [resolvable:$true] %s199
          %205 = dma.hbm_to_vmem [thread:$0]  %s2, 1024, %s200, [#allocation7], 64, 64, 4
        $region16: #{tpu_custom_call.1} parent=11 // pred_fallthru
          _
        // Predicated region
        $region17: #{tpu_custom_call.1} parent=11 // pred_check
          %p206 = pneg %p129
        $region18: #{tpu_custom_call.1} parent=11 // pred_check_branch
          %208 = sbr.rel (%p206) target = $region20
        $region19: #{tpu_custom_call.1} parent=11 // pred_region
          _
        $region20: #{tpu_custom_call.1} parent=11 // pred_fallthru
          _
        // Predicated region
        $region21: #{tpu_custom_call.1} parent=11 // pred_check
          %p209 = pneg %p150
        $region22: #{tpu_custom_call.1} parent=11 // pred_check_branch
          %211 = sbr.rel (%p209) target = $region24
        $region23: #{tpu_custom_call.1} parent=11 // pred_region
          _
        $region24: #{tpu_custom_call.1} parent=11 // pred_fallthru
          _
      $region12: #{tpu_custom_call.1} parent=5 // pred_fallthru
        _
      %p212 = scmp.lt.s32.totalorder %s21, 2
      // Predicated region
      $region25: #{tpu_custom_call.1} parent=5 // pred_check
        %p213 = pneg %p212
      $region26: #{tpu_custom_call.1} parent=5 // pred_check_branch
        %215 = sbr.rel (%p213) target = $region28
      $region27: #{tpu_custom_call.1} parent=5 // pred_region
        // Predicated region
        $region29: #{tpu_custom_call.1} parent=27 // pred_check
          %p216 = pneg %p55
        $region30: #{tpu_custom_call.1} parent=27 // pred_check_branch
          %218 = sbr.rel (%p216) target = $region32
        $region31: #{tpu_custom_call.1} parent=27 // pred_region
          %s219 = sand.u32 %s45, 1
          %s220 = scalar_lea.sflag [#allocation4], %s219
          %s221 = sand.u32 %s45, 1
          %s222 = smul.addr %s221, 64
          %s223 = scalar_lea.vmem [#allocation3], %s222
          %s224 = smul.u32 16, %s29
          %s226 = ssub.s32 1024, 1024
          %227 = vsyncadd %s220, %s226
          %s228 = smul.addr %s28, 16
          %s229 = sadd.s32 %s224, %s228
          %s230 = smul.addr %s229, 64
          %s231 = scalar_lea.hbm %s0, %s230
          %s232 = sshll.u32 %s223, 4
          %s233 = int_to_ptr.vmem [resolvable:$true] %s232
          %238 = dma.hbm_to_vmem [thread:$0]  %s231, 1024, %s233, %s220, 64, 64, 4
        $region32: #{tpu_custom_call.1} parent=27 // pred_fallthru
          _
        // Predicated region
        $region33: #{tpu_custom_call.1} parent=27 // pred_check
          %p239 = pneg %p81
        $region34: #{tpu_custom_call.1} parent=27 // pred_check_branch
          %241 = sbr.rel (%p239) target = $region36
        $region35: #{tpu_custom_call.1} parent=27 // pred_region
          %s242 = sand.u32 %s21, 1
          %s243 = scalar_lea.sflag [#allocation7], %s242
          %s244 = sand.u32 %s71, 1
          %s245 = smul.addr %s244, 64
          %s246 = scalar_lea.vmem [#allocation6], %s245
          %s248 = ssub.s32 1024, 1024
          %249 = vsyncadd %s243, %s248
          %s250 = smul.addr %s28, 16
          %s251 = smul.addr %s250, 64
          %s252 = scalar_lea.hbm %s1, %s251
          %s253 = sshll.u32 %s246, 4
          %s254 = int_to_ptr.vmem [resolvable:$true] %s253
          %259 = dma.hbm_to_vmem [thread:$0]  %s252, 1024, %s254, %s243, 64, 64, 4
        $region36: #{tpu_custom_call.1} parent=27 // pred_fallthru
          _
      $region28: #{tpu_custom_call.1} parent=5 // pred_fallthru
        _
      %p260 = scmp.le.s32.totalorder 1, %s21
      %p261 = scmp.lt.s32.totalorder %s21, 3
      %p262 = pnand %p260, %p261
      %p263 = pneg %p262
      // Predicated region
      $region37: #{tpu_custom_call.1} parent=5 // pred_check
        _
      $region38: #{tpu_custom_call.1} parent=5 // pred_check_branch
        %265 = sbr.rel (%p262) target = $region40
      $region39: #{tpu_custom_call.1} parent=5 // pred_region
        %s266 = ssub.s32 %s21, 1
        %s267 = sand.u32 %s48, 1
        %s268 = scalar_lea.sflag [#allocation4], %s267
        %s269 = sand.u32 %s48, 1
        %s270 = smul.addr %s269, 64
        %s271 = scalar_lea.vmem [#allocation3], %s270
        // Predicated region
        $region41: #{tpu_custom_call.1} parent=39 // pred_check
          %p272 = pneg %p61
        $region42: #{tpu_custom_call.1} parent=39 // pred_check_branch
          %274 = sbr.rel (%p272) target = $region44
        $region43: #{tpu_custom_call.1} parent=39 // pred_region
          %275 = dma.done %s268, 1024
        $region44: #{tpu_custom_call.1} parent=39 // pred_fallthru
          _
        %s276 = sand.u32 %s26, 1
        %s277 = scalar_lea.sflag [#allocation7], %s276
        %s278 = sand.u32 %s74, 1
        %s279 = smul.addr %s278, 64
        %s280 = scalar_lea.vmem [#allocation6], %s279
        // Predicated region
        $region45: #{tpu_custom_call.1} parent=39 // pred_check
          %p281 = pneg %p87
        $region46: #{tpu_custom_call.1} parent=39 // pred_check_branch
          %283 = sbr.rel (%p281) target = $region48
        $region47: #{tpu_custom_call.1} parent=39 // pred_region
          %284 = dma.done %s277, 1024
        $region48: #{tpu_custom_call.1} parent=39 // pred_fallthru
          _
        // Predicated region
        $region49: #{tpu_custom_call.1} parent=39 // pred_check
          %p285 = pneg %p108
        $region50: #{tpu_custom_call.1} parent=39 // pred_check_branch
          %287 = sbr.rel (%p285) target = $region52
        $region51: #{tpu_custom_call.1} parent=39 // pred_region
          %288 = dma.done [#allocation7], 1024
        $region52: #{tpu_custom_call.1} parent=39 // pred_fallthru
          _
        %s289 = sand.u32 %s48, 1
        %s290 = scalar_lea.sflag [#allocation4], %s289
        %s291 = sand.u32 %s48, 1
        %s292 = smul.addr %s291, 64
        %s293 = scalar_lea.vmem [#allocation3], %s292
        %p294 = pneg %p61
        %p295 = pneg %p58
        %s296 = sand.u32 %s26, 1
        %s297 = scalar_lea.sflag [#allocation7], %s296
        %s298 = sand.u32 %s74, 1
        %s299 = smul.addr %s298, 64
        %s300 = scalar_lea.vmem [#allocation6], %s299
        %p301 = pneg %p87
        %p302 = pneg %p84
        %p303 = pneg %p108
        %p304 = pneg %p105
        %p305 = pneg %p129
        %p306 = pneg %p126
        %p307 = pneg %p150
        %p308 = pneg %p147
        %p309 = pneg %p178
        %p310 = pneg %p175
        %s311 = sand.u32 %s165, 1
        %s312 = scalar_lea.sflag [#allocation5], %s311
        %s313 = sand.u32 %s165, 1
        %s314 = smul.addr %s313, 64
        %s315 = scalar_lea.vmem [#allocation9], %s314
        %s316 = smul.u32 16, %s31
        %s317 = smul.u32 16, %s31
        %v319 = vld [vmem:[%s271] sm:$0xf]
        %v320 = vld [vmem:[%s271 + $0x4] sm:$0xf]
        %v321 = vld [vmem:[%s271 + $0x8] sm:$0xf]
        %v322 = vld [vmem:[%s271 + $0xc] sm:$0xf]
        %v323 = vld [vmem:[%s271 + $0x10] sm:$0xf]
        %v324 = vld [vmem:[%s271 + $0x14] sm:$0xf]
        %v325 = vld [vmem:[%s271 + $0x18] sm:$0xf]
        %v326 = vld [vmem:[%s271 + $0x1c] sm:$0xf]
        %v327 = vld [vmem:[%s271 + $0x20] sm:$0xf]
        %v328 = vld [vmem:[%s271 + $0x24] sm:$0xf]
        %v329 = vld [vmem:[%s271 + $0x28] sm:$0xf]
        %v330 = vld [vmem:[%s271 + $0x2c] sm:$0xf]
        %v331 = vld [vmem:[%s271 + $0x30] sm:$0xf]
        %v332 = vld [vmem:[%s271 + $0x34] sm:$0xf]
        %v333 = vld [vmem:[%s271 + $0x38] sm:$0xf]
        %v334 = vld [vmem:[%s271 + $0x3c] sm:$0xf]
        %v335 = vld [vmem:[%s280] sm:$0xf]
        %v336 = vld [vmem:[%s280 + $0x4] sm:$0xf]
        %v337 = vld [vmem:[%s280 + $0x8] sm:$0xf]
        %v338 = vld [vmem:[%s280 + $0xc] sm:$0xf]
        %v339 = vld [vmem:[%s280 + $0x10] sm:$0xf]
        %v340 = vld [vmem:[%s280 + $0x14] sm:$0xf]
        %v341 = vld [vmem:[%s280 + $0x18] sm:$0xf]
        %v342 = vld [vmem:[%s280 + $0x1c] sm:$0xf]
        %v343 = vld [vmem:[%s280 + $0x20] sm:$0xf]
        %v344 = vld [vmem:[%s280 + $0x24] sm:$0xf]
        %v345 = vld [vmem:[%s280 + $0x28] sm:$0xf]
        %v346 = vld [vmem:[%s280 + $0x2c] sm:$0xf]
        %v347 = vld [vmem:[%s280 + $0x30] sm:$0xf]
        %v348 = vld [vmem:[%s280 + $0x34] sm:$0xf]
        %v349 = vld [vmem:[%s280 + $0x38] sm:$0xf]
        %v350 = vld [vmem:[%s280 + $0x3c] sm:$0xf]
        %v367 = vunpack.c.l.b16 %v319
        %v368 = vunpack.c.l.b16 %v320
        %v369 = vunpack.c.l.b16 %v321
        %v370 = vunpack.c.l.b16 %v322
        %v371 = vunpack.c.l.b16 %v323
        %v372 = vunpack.c.l.b16 %v324
        %v373 = vunpack.c.l.b16 %v325
        %v374 = vunpack.c.l.b16 %v326
        %v375 = vunpack.c.l.b16 %v327
        %v376 = vunpack.c.l.b16 %v328
        %v377 = vunpack.c.l.b16 %v329
        %v378 = vunpack.c.l.b16 %v330
        %v379 = vunpack.c.l.b16 %v331
        %v380 = vunpack.c.l.b16 %v332
        %v381 = vunpack.c.l.b16 %v333
        %v382 = vunpack.c.l.b16 %v334
        %v383 = vpack.c.b16 %v368, %v367
        %v384 = vpack.c.b16 %v370, %v369
        %v385 = vpack.c.b16 %v372, %v371
        %v386 = vpack.c.b16 %v374, %v373
        %v387 = vpack.c.b16 %v376, %v375
        %v388 = vpack.c.b16 %v378, %v377
        %v389 = vpack.c.b16 %v380, %v379
        %v390 = vpack.c.b16 %v382, %v381
        %v415 = vunpack.c.l.b16 %v335
        %v416 = vunpack.c.l.b16 %v336
        %v417 = vunpack.c.l.b16 %v337
        %v418 = vunpack.c.l.b16 %v338
        %v419 = vunpack.c.l.b16 %v339
        %v420 = vunpack.c.l.b16 %v340
        %v421 = vunpack.c.l.b16 %v341
        %v422 = vunpack.c.l.b16 %v342
        %v423 = vunpack.c.l.b16 %v343
        %v424 = vunpack.c.l.b16 %v344
        %v425 = vunpack.c.l.b16 %v345
        %v426 = vunpack.c.l.b16 %v346
        %v427 = vunpack.c.l.b16 %v347
        %v428 = vunpack.c.l.b16 %v348
        %v429 = vunpack.c.l.b16 %v349
        %v430 = vunpack.c.l.b16 %v350
        %v431 = vpack.c.b16 %v416, %v415
        %v432 = vpack.c.b16 %v418, %v417
        %v433 = vpack.c.b16 %v420, %v419
        %v434 = vpack.c.b16 %v422, %v421
        %v435 = vpack.c.b16 %v424, %v423
        %v436 = vpack.c.b16 %v426, %v425
        %v437 = vpack.c.b16 %v428, %v427
        %v438 = vpack.c.b16 %v430, %v429
        %447 = vmatprep.subr.bf16.mxu0 0
        %448 = vmatpush1.bf16.msra.mxu0 %v431
        %449 = vmatprep.subr.bf16.mxu0 0
        %450 = vmatpush1.bf16.msra.mxu0 %v432
        %451 = vmatprep.subr.bf16.mxu0 0
        %452 = vmatpush1.bf16.msra.mxu0 %v433
        %453 = vmatprep.subr.bf16.mxu0 0
        %454 = vmatpush1.bf16.msra.mxu0 %v434
        %455 = vmatprep.subr.bf16.mxu0 0
        %456 = vmatpush1.bf16.msra.mxu0 %v435
        %457 = vmatprep.subr.bf16.mxu0 0
        %458 = vmatpush1.bf16.msra.mxu0 %v436
        %459 = vmatprep.subr.bf16.mxu0 0
        %460 = vmatpush1.bf16.msra.mxu0 %v437
        %461 = vmatprep.subr.bf16.mxu0 0
        %462 = vmatpush1.bf16.msra.mxu0 %v438
        %463 = vmatprep.subr.bf16.mxu0 0
        %464 = vmatpush1.bf16.msra.mxu0 0
        %465 = vmatprep.subr.bf16.mxu0 0
        %466 = vmatpush1.bf16.msra.mxu0 0
        %467 = vmatprep.subr.bf16.mxu0 0
        %468 = vmatpush1.bf16.msra.mxu0 0
        %469 = vmatprep.subr.bf16.mxu0 0
        %470 = vmatpush1.bf16.msra.mxu0 0
        %471 = vmatprep.subr.bf16.mxu0 0
        %472 = vmatpush1.bf16.msra.mxu0 0
        %473 = vmatprep.subr.bf16.mxu0 0
        %474 = vmatpush1.bf16.msra.mxu0 0
        %475 = vmatprep.subr.bf16.mxu0 0
        %476 = vmatpush1.bf16.msra.mxu0 0
        %477 = vmatprep.subr.bf16.mxu0 0
        %478 = vmatpush1.bf16.msra.mxu0 0
        %479 = vmatprep.mubr.bf16.mxu0 0
        %480 = vmatmul.mubr.bf16.gmra.mrb[0].mxu0 %v383
        %v481 = vpop.f32.mrb[0].mxu0
        %v482 = vadd.f32 0.0, %v481
        %v483 = vpop.f32.mrb[0].mxu0
        %v484 = vpop.f32.mrb[0].mxu0
        %v485 = vadd.f32 0.0, %v484
        %v486 = vpop.f32.mrb[0].mxu0
        %487 = vmatprep.mubr.bf16.mxu0 0
        %488 = vmatmul.mubr.bf16.gmra.mrb[0].mxu0 %v384
        %v489 = vpop.f32.mrb[0].mxu0
        %v490 = vadd.f32 0.0, %v489
        %v491 = vpop.f32.mrb[0].mxu0
        %v492 = vpop.f32.mrb[0].mxu0
        %v493 = vadd.f32 0.0, %v492
        %v494 = vpop.f32.mrb[0].mxu0
        %495 = vmatprep.mubr.bf16.mxu0 0
        %496 = vmatmul.mubr.bf16.gmra.mrb[0].mxu0 %v385
        %v497 = vpop.f32.mrb[0].mxu0
        %v498 = vadd.f32 0.0, %v497
        %v499 = vpop.f32.mrb[0].mxu0
        %v500 = vpop.f32.mrb[0].mxu0
        %v501 = vadd.f32 0.0, %v500
        %v502 = vpop.f32.mrb[0].mxu0
        %503 = vmatprep.mubr.bf16.mxu0 0
        %504 = vmatmul.mubr.bf16.gmra.mrb[0].mxu0 %v386
        %v505 = vpop.f32.mrb[0].mxu0
        %v506 = vadd.f32 0.0, %v505
        %v507 = vpop.f32.mrb[0].mxu0
        %v508 = vpop.f32.mrb[0].mxu0
        %v509 = vadd.f32 0.0, %v508
        %v510 = vpop.f32.mrb[0].mxu0
        %511 = vmatprep.mubr.bf16.mxu0 0
        %512 = vmatmul.mubr.bf16.gmra.mrb[0].mxu0 %v387
        %v513 = vpop.f32.mrb[0].mxu0
        %v514 = vadd.f32 0.0, %v513
        %v515 = vpop.f32.mrb[0].mxu0
        %v516 = vpop.f32.mrb[0].mxu0
        %v517 = vadd.f32 0.0, %v516
        %v518 = vpop.f32.mrb[0].mxu0
        %519 = vmatprep.mubr.bf16.mxu0 0
        %520 = vmatmul.mubr.bf16.gmra.mrb[0].mxu0 %v388
        %v521 = vpop.f32.mrb[0].mxu0
        %v522 = vadd.f32 0.0, %v521
        %v523 = vpop.f32.mrb[0].mxu0
        %v524 = vpop.f32.mrb[0].mxu0
        %v525 = vadd.f32 0.0, %v524
        %v526 = vpop.f32.mrb[0].mxu0
        %527 = vmatprep.mubr.bf16.mxu0 0
        %528 = vmatmul.mubr.bf16.gmra.mrb[0].mxu0 %v389
        %v529 = vpop.f32.mrb[0].mxu0
        %v530 = vadd.f32 0.0, %v529
        %v531 = vpop.f32.mrb[0].mxu0
        %v532 = vpop.f32.mrb[0].mxu0
        %v533 = vadd.f32 0.0, %v532
        %v534 = vpop.f32.mrb[0].mxu0
        %535 = vmatprep.mubr.bf16.mxu0 0
        %536 = vmatmul.mubr.bf16.gmra.mrb[0].mxu0 %v390
        %v537 = vpop.f32.mrb[0].mxu0
        %v538 = vadd.f32 0.0, %v537
        %v539 = vpop.f32.mrb[0].mxu0
        %v540 = vpop.f32.mrb[0].mxu0
        %v541 = vadd.f32 0.0, %v540
        %v542 = vpop.f32.mrb[0].mxu0
        %543 = vdwg.mxu0
        %v544 = vpack.c.bf16 %v485, %v482
        %v545 = vpack.c.bf16 %v493, %v490
        %v546 = vpack.c.bf16 %v501, %v498
        %v547 = vpack.c.bf16 %v509, %v506
        %v548 = vpack.c.bf16 %v517, %v514
        %v549 = vpack.c.bf16 %v525, %v522
        %v550 = vpack.c.bf16 %v533, %v530
        %v551 = vpack.c.bf16 %v541, %v538
        %v552 = vld [vmem:[#allocation8] sm:$0xf]
        %v553 = vld [vmem:[#allocation8 + $0x4] sm:$0xf]
        %v554 = vld [vmem:[#allocation8 + $0x8] sm:$0xf]
        %v555 = vld [vmem:[#allocation8 + $0xc] sm:$0xf]
        %v556 = vld [vmem:[#allocation8 + $0x10] sm:$0xf]
        %v557 = vld [vmem:[#allocation8 + $0x14] sm:$0xf]
        %v558 = vld [vmem:[#allocation8 + $0x18] sm:$0xf]
        %v559 = vld [vmem:[#allocation8 + $0x1c] sm:$0xf]
        %v560 = vld [vmem:[#allocation8 + $0x20] sm:$0xf]
        %v561 = vld [vmem:[#allocation8 + $0x24] sm:$0xf]
        %v562 = vld [vmem:[#allocation8 + $0x28] sm:$0xf]
        %v563 = vld [vmem:[#allocation8 + $0x2c] sm:$0xf]
        %v564 = vld [vmem:[#allocation8 + $0x30] sm:$0xf]
        %v565 = vld [vmem:[#allocation8 + $0x34] sm:$0xf]
        %v566 = vld [vmem:[#allocation8 + $0x38] sm:$0xf]
        %v567 = vld [vmem:[#allocation8 + $0x3c] sm:$0xf]
        %v568 = vld [vmem:[%s3] sm:$0x1]
        %v570 = vlaneseq
        %v571 = vshrl.u32 %v570, 7
        %v572 = vsub.s32 0, %v571
        %v573 = vrot.slane %v568, %v572
        %v591 = vunpack.c.l.b16 %v552
        %v592 = vunpack.c.l.b16 %v553
        %v593 = vunpack.c.l.b16 %v554
        %v594 = vunpack.c.l.b16 %v555
        %v595 = vunpack.c.l.b16 %v556
        %v596 = vunpack.c.l.b16 %v557
        %v597 = vunpack.c.l.b16 %v558
        %v598 = vunpack.c.l.b16 %v559
        %v599 = vunpack.c.l.b16 %v560
        %v600 = vunpack.c.l.b16 %v561
        %v601 = vunpack.c.l.b16 %v562
        %v602 = vunpack.c.l.b16 %v563
        %v603 = vunpack.c.l.b16 %v564
        %v604 = vunpack.c.l.b16 %v565
        %v605 = vunpack.c.l.b16 %v566
        %v606 = vunpack.c.l.b16 %v567
        %v607 = vpack.c.b16 %v592, %v591
        %v608 = vpack.c.b16 %v594, %v593
        %v609 = vpack.c.b16 %v596, %v595
        %v610 = vpack.c.b16 %v598, %v597
        %v611 = vpack.c.b16 %v600, %v599
        %v612 = vpack.c.b16 %v602, %v601
        %v613 = vpack.c.b16 %v604, %v603
        %v614 = vpack.c.b16 %v606, %v605
        %623 = vmatprep.subr.bf16.mxu0 0
        %624 = vmatpush1.bf16.msra.mxu0 %v607
        %625 = vmatprep.subr.bf16.mxu0 0
        %626 = vmatpush1.bf16.msra.mxu0 %v608
        %627 = vmatprep.subr.bf16.mxu0 0
        %628 = vmatpush1.bf16.msra.mxu0 %v609
        %629 = vmatprep.subr.bf16.mxu0 0
        %630 = vmatpush1.bf16.msra.mxu0 %v610
        %631 = vmatprep.subr.bf16.mxu0 0
        %632 = vmatpush1.bf16.msra.mxu0 %v611
        %633 = vmatprep.subr.bf16.mxu0 0
        %634 = vmatpush1.bf16.msra.mxu0 %v612
        %635 = vmatprep.subr.bf16.mxu0 0
        %636 = vmatpush1.bf16.msra.mxu0 %v613
        %637 = vmatprep.subr.bf16.mxu0 0
        %638 = vmatpush1.bf16.msra.mxu0 %v614
        %639 = vmatprep.subr.bf16.mxu0 0
        %640 = vmatpush1.bf16.msra.mxu0 0
        %641 = vmatprep.subr.bf16.mxu0 0
        %642 = vmatpush1.bf16.msra.mxu0 0
        %643 = vmatprep.subr.bf16.mxu0 0
        %644 = vmatpush1.bf16.msra.mxu0 0
        %645 = vmatprep.subr.bf16.mxu0 0
        %646 = vmatpush1.bf16.msra.mxu0 0
        %647 = vmatprep.subr.bf16.mxu0 0
        %648 = vmatpush1.bf16.msra.mxu0 0
        %649 = vmatprep.subr.bf16.mxu0 0
        %650 = vmatpush1.bf16.msra.mxu0 0
        %651 = vmatprep.subr.bf16.mxu0 0
        %652 = vmatpush1.bf16.msra.mxu0 0
        %653 = vmatprep.subr.bf16.mxu0 0
        %654 = vmatpush1.bf16.msra.mxu0 0
        %655 = vmatprep.mubr.bf16.mxu0 0
        %656 = vmatmul.mubr.bf16.gmra.mrb[0].mxu0 %v544
        %v657 = vpop.f32.mrb[0].mxu0
        %v658 = vadd.f32 %v573, %v657
        %v659 = vpop.f32.mrb[0].mxu0
        %v660 = vpop.f32.mrb[0].mxu0
        %v661 = vadd.f32 %v573, %v660
        %v662 = vpop.f32.mrb[0].mxu0
        %663 = vmatprep.mubr.bf16.mxu0 0
        %664 = vmatmul.mubr.bf16.gmra.mrb[0].mxu0 %v545
        %v665 = vpop.f32.mrb[0].mxu0
        %v666 = vadd.f32 %v573, %v665
        %v667 = vpop.f32.mrb[0].mxu0
        %v668 = vpop.f32.mrb[0].mxu0
        %v669 = vadd.f32 %v573, %v668
        %v670 = vpop.f32.mrb[0].mxu0
        %671 = vmatprep.mubr.bf16.mxu0 0
        %672 = vmatmul.mubr.bf16.gmra.mrb[0].mxu0 %v546
        %v673 = vpop.f32.mrb[0].mxu0
        %v674 = vadd.f32 %v573, %v673
        %v675 = vpop.f32.mrb[0].mxu0
        %v676 = vpop.f32.mrb[0].mxu0
        %v677 = vadd.f32 %v573, %v676
        %v678 = vpop.f32.mrb[0].mxu0
        %679 = vmatprep.mubr.bf16.mxu0 0
        %680 = vmatmul.mubr.bf16.gmra.mrb[0].mxu0 %v547
        %v681 = vpop.f32.mrb[0].mxu0
        %v682 = vadd.f32 %v573, %v681
        %v683 = vpop.f32.mrb[0].mxu0
        %v684 = vpop.f32.mrb[0].mxu0
        %v685 = vadd.f32 %v573, %v684
        %v686 = vpop.f32.mrb[0].mxu0
        %687 = vmatprep.mubr.bf16.mxu0 0
        %688 = vmatmul.mubr.bf16.gmra.mrb[0].mxu0 %v548
        %v689 = vpop.f32.mrb[0].mxu0
        %v690 = vadd.f32 %v573, %v689
        %v691 = vpop.f32.mrb[0].mxu0
        %v692 = vpop.f32.mrb[0].mxu0
        %v693 = vadd.f32 %v573, %v692
        %v694 = vpop.f32.mrb[0].mxu0
        %695 = vmatprep.mubr.bf16.mxu0 0
        %696 = vmatmul.mubr.bf16.gmra.mrb[0].mxu0 %v549
        %v697 = vpop.f32.mrb[0].mxu0
        %v698 = vadd.f32 %v573, %v697
        %v699 = vpop.f32.mrb[0].mxu0
        %v700 = vpop.f32.mrb[0].mxu0
        %v701 = vadd.f32 %v573, %v700
        %v702 = vpop.f32.mrb[0].mxu0
        %703 = vmatprep.mubr.bf16.mxu0 0
        %704 = vmatmul.mubr.bf16.gmra.mrb[0].mxu0 %v550
        %v705 = vpop.f32.mrb[0].mxu0
        %v706 = vadd.f32 %v573, %v705
        %v707 = vpop.f32.mrb[0].mxu0
        %v708 = vpop.f32.mrb[0].mxu0
        %v709 = vadd.f32 %v573, %v708
        %v710 = vpop.f32.mrb[0].mxu0
        %711 = vmatprep.mubr.bf16.mxu0 0
        %712 = vmatmul.mubr.bf16.gmra.mrb[0].mxu0 %v551
        %v713 = vpop.f32.mrb[0].mxu0
        %v714 = vadd.f32 %v573, %v713
        %v715 = vpop.f32.mrb[0].mxu0
        %v716 = vpop.f32.mrb[0].mxu0
        %v717 = vadd.f32 %v573, %v716
        %v718 = vpop.f32.mrb[0].mxu0
        %719 = vdwg.mxu0
        %s720 = sld [smem:[#allocation2]]
        %vm721 = vcmp.ge.f32.partialorder %v658, 0.0
        %vm722 = vcmp.ge.f32.partialorder %v661, 0.0
        %vm723 = vcmp.ge.f32.partialorder %v666, 0.0
        %vm724 = vcmp.ge.f32.partialorder %v669, 0.0
        %vm725 = vcmp.ge.f32.partialorder %v674, 0.0
        %vm726 = vcmp.ge.f32.partialorder %v677, 0.0
        %vm727 = vcmp.ge.f32.partialorder %v682, 0.0
        %vm728 = vcmp.ge.f32.partialorder %v685, 0.0
        %vm729 = vcmp.ge.f32.partialorder %v690, 0.0
        %vm730 = vcmp.ge.f32.partialorder %v693, 0.0
        %vm731 = vcmp.ge.f32.partialorder %v698, 0.0
        %vm732 = vcmp.ge.f32.partialorder %v701, 0.0
        %vm733 = vcmp.ge.f32.partialorder %v706, 0.0
        %vm734 = vcmp.ge.f32.partialorder %v709, 0.0
        %vm735 = vcmp.ge.f32.partialorder %v714, 0.0
        %vm736 = vcmp.ge.f32.partialorder %v717, 0.0
        %v737 = vstv %s720
        %v738 = vmul.f32 %v737, %v658
        %v739 = vmul.f32 %v737, %v661
        %v740 = vmul.f32 %v737, %v666
        %v741 = vmul.f32 %v737, %v669
        %v742 = vmul.f32 %v737, %v674
        %v743 = vmul.f32 %v737, %v677
        %v744 = vmul.f32 %v737, %v682
        %v745 = vmul.f32 %v737, %v685
        %v746 = vmul.f32 %v737, %v690
        %v747 = vmul.f32 %v737, %v693
        %v748 = vmul.f32 %v737, %v698
        %v749 = vmul.f32 %v737, %v701
        %v750 = vmul.f32 %v737, %v706
        %v751 = vmul.f32 %v737, %v709
        %v752 = vmul.f32 %v737, %v714
        %v753 = vmul.f32 %v737, %v717
        %v754 = vsel %vm721, %v658, %v738
        %v755 = vsel %vm722, %v661, %v739
        %v756 = vsel %vm723, %v666, %v740
        %v757 = vsel %vm724, %v669, %v741
        %v758 = vsel %vm725, %v674, %v742
        %v759 = vsel %vm726, %v677, %v743
        %v760 = vsel %vm727, %v682, %v744
        %v761 = vsel %vm728, %v685, %v745
        %v762 = vsel %vm729, %v690, %v746
        %v763 = vsel %vm730, %v693, %v747
        %v764 = vsel %vm731, %v698, %v748
        %v765 = vsel %vm732, %v701, %v749
        %v766 = vsel %vm733, %v706, %v750
        %v767 = vsel %vm734, %v709, %v751
        %v768 = vsel %vm735, %v714, %v752
        %v769 = vsel %vm736, %v717, %v753
        %v770 = vpack.c.bf16 %v755, %v754
        %v771 = vpack.c.bf16 %v757, %v756
        %v772 = vpack.c.bf16 %v759, %v758
        %v773 = vpack.c.bf16 %v761, %v760
        %v774 = vpack.c.bf16 %v763, %v762
        %v775 = vpack.c.bf16 %v765, %v764
        %v776 = vpack.c.bf16 %v767, %v766
        %v777 = vpack.c.bf16 %v769, %v768
        %v786 = vunpack.c.l.b16 %v770
        %v787 = vunpack.c.h.b16 %v770
        %v788 = vunpack.c.l.b16 %v771
        %v789 = vunpack.c.h.b16 %v771
        %v790 = vunpack.c.l.b16 %v772
        %v791 = vunpack.c.h.b16 %v772
        %v792 = vunpack.c.l.b16 %v773
        %v793 = vunpack.c.h.b16 %v773
        %v794 = vunpack.c.l.b16 %v774
        %v795 = vunpack.c.h.b16 %v774
        %v796 = vunpack.c.l.b16 %v775
        %v797 = vunpack.c.h.b16 %v775
        %v798 = vunpack.c.l.b16 %v776
        %v799 = vunpack.c.h.b16 %v776
        %v800 = vunpack.c.l.b16 %v777
        %v801 = vunpack.c.h.b16 %v777
        %v802 = vpack.c.b16 %v786, %v786
        %v803 = vpack.c.b16 %v787, %v787
        %v804 = vpack.c.b16 %v788, %v788
        %v805 = vpack.c.b16 %v789, %v789
        %v806 = vpack.c.b16 %v790, %v790
        %v807 = vpack.c.b16 %v791, %v791
        %v808 = vpack.c.b16 %v792, %v792
        %v809 = vpack.c.b16 %v793, %v793
        %v810 = vpack.c.b16 %v794, %v794
        %v811 = vpack.c.b16 %v795, %v795
        %v812 = vpack.c.b16 %v796, %v796
        %v813 = vpack.c.b16 %v797, %v797
        %v814 = vpack.c.b16 %v798, %v798
        %v815 = vpack.c.b16 %v799, %v799
        %v816 = vpack.c.b16 %v800, %v800
        %v817 = vpack.c.b16 %v801, %v801
        %834 = vst [vmem:[%s315] sm:$0xf] %v802
        %835 = vst [vmem:[%s315 + $0x4] sm:$0xf] %v803
        %836 = vst [vmem:[%s315 + $0x8] sm:$0xf] %v804
        %837 = vst [vmem:[%s315 + $0xc] sm:$0xf] %v805
        %838 = vst [vmem:[%s315 + $0x10] sm:$0xf] %v806
        %839 = vst [vmem:[%s315 + $0x14] sm:$0xf] %v807
        %840 = vst [vmem:[%s315 + $0x18] sm:$0xf] %v808
        %841 = vst [vmem:[%s315 + $0x1c] sm:$0xf] %v809
        %842 = vst [vmem:[%s315 + $0x20] sm:$0xf] %v810
        %843 = vst [vmem:[%s315 + $0x24] sm:$0xf] %v811
        %844 = vst [vmem:[%s315 + $0x28] sm:$0xf] %v812
        %845 = vst [vmem:[%s315 + $0x2c] sm:$0xf] %v813
        %846 = vst [vmem:[%s315 + $0x30] sm:$0xf] %v814
        %847 = vst [vmem:[%s315 + $0x34] sm:$0xf] %v815
        %848 = vst [vmem:[%s315 + $0x38] sm:$0xf] %v816
        %849 = vst [vmem:[%s315 + $0x3c] sm:$0xf] %v817
        %s850 = sand.u32 %s165, 1
        %s851 = scalar_lea.sflag [#allocation5], %s850
        %s852 = sand.u32 %s165, 1
        %s853 = smul.addr %s852, 64
        %s854 = scalar_lea.vmem [#allocation9], %s853
        // Predicated region
        $region53: #{tpu_custom_call.1} parent=39 // pred_check
          %p855 = pneg %p175
        $region54: #{tpu_custom_call.1} parent=39 // pred_check_branch
          %857 = sbr.rel (%p855) target = $region56
        $region55: #{tpu_custom_call.1} parent=39 // pred_region
          %s858 = smul.u32 16, %s31
          %s860 = ssub.s32 1024, 1024
          %861 = vsyncadd %s851, %s860
          %s862 = smul.addr %s30, 16
          %s863 = sadd.s32 %s858, %s862
          %s864 = smul.addr %s863, 64
          %s865 = scalar_lea.hbm %s5, %s864
          %s866 = sshll.u32 %s854, 4
          %s867 = int_to_ptr.vmem [resolvable:$true] %s866
          %872 = dma.vmem_to_hbm [thread:$0]  %s867, 1024, %s865, %s851, 64, 64, 4
        $region56: #{tpu_custom_call.1} parent=39 // pred_fallthru
          _
      $region40: #{tpu_custom_call.1} parent=5 // pred_fallthru
        _
      %p873 = scmp.le.s32.totalorder 2, %s21
      // Predicated region
      $region57: #{tpu_custom_call.1} parent=5 // pred_check
        %p874 = pneg %p873
      $region58: #{tpu_custom_call.1} parent=5 // pred_check_branch
        %876 = sbr.rel (%p874) target = $region60
      $region59: #{tpu_custom_call.1} parent=5 // pred_region
        %s877 = ssub.s32 %s21, 2
        // Predicated region
        $region61: #{tpu_custom_call.1} parent=59 // pred_check
          %p878 = pneg %p181
        $region62: #{tpu_custom_call.1} parent=59 // pred_check_branch
          %880 = sbr.rel (%p878) target = $region64
        $region63: #{tpu_custom_call.1} parent=59 // pred_region
          %s881 = sand.u32 %s166, 1
          %s882 = scalar_lea.sflag [#allocation5], %s881
          %s883 = sand.u32 %s166, 1
          %s884 = smul.addr %s883, 64
          %s885 = scalar_lea.vmem [#allocation9], %s884
          %886 = dma.done %s882, 1024
        $region64: #{tpu_custom_call.1} parent=59 // pred_fallthru
          _
      $region60: #{tpu_custom_call.1} parent=5 // pred_fallthru
        _
    $region6: #{tpu_custom_call.1} parent=1 // loop_footer
      %s25 = sadd.s32 1, %s21
    $region7: #{tpu_custom_call.1} parent=1 // loop_footer_branch
      %20 = sbr.rel target = $region3
    $region8: #{tpu_custom_call.1} parent=1 // loop_exit
      _
    %887 = vsyncpa [#allocation4], 1
    %s888 = scalar_lea.sflag [#allocation4], 1
    %889 = vsyncpa %s888, 1
    %890 = vsyncpa [#allocation7], 1
    %s891 = scalar_lea.sflag [#allocation7], 1
    %892 = vsyncpa %s891, 1
    %893 = vsyncpa [#allocation5], 1
    %s894 = scalar_lea.sflag [#allocation5], 1
    %895 = vsyncpa %s894, 1

</llo_original>
